<compile_context>
chip_gen: v7x
topology: tpu7x:2x2x1
jax: 0.10.0
libtpu: 0.0.40
codegen_flags: <defaults>
</compile_context>

<pallas_src>
import functools
import math

import jax
import jax.numpy as jnp
from jax import lax
from jax.experimental import pallas as pl
from jax.experimental.pallas import tpu as pltpu


# bf16 MXU operands (f32 accumulate) for all big matmuls; jnp.float32 = exact parity.
MXU_DTYPE = jnp.bfloat16


def _pick_block(n, candidates=(8, 4, 2)):
    """Largest batch block that keeps >= 2 grid steps (v7x megacore)."""
    for c in candidates:
        if n % c == 0 and n // c >= 2:
            return c
    return 1


def _pick_fc_block(n):
    """FC-head row block: multiple of 8 (sublane-aligned) with >= 2 steps, else full n."""
    for c in (128, 64, 256, 32, 16, 8):
        if n % c == 0 and n // c >= 2:
            return c
    return n


# ---------------------------------------------------------------------------
# Stage 1: fused ConvBlocks  (Conv1d 'same' + ReLU + MaxPool1d + Dropout[eval])
# ---------------------------------------------------------------------------
def _conv_pool_kernel(lhs_ref, w_ref, b_ref, o_ref, *, pool_size):
    """im2col conv for all ConvBlocks at once, + bias + ReLU + MaxPool(pool_size).

    lhs_ref: (1, pool, nb*L_out, KC_pad)  im2col LHS, pool-phase major (MXU dtype)
    w_ref  : (KC_pad, C_out_total)        combined taps of all conv blocks (MXU dtype)
    b_ref  : (1, C_out_total)             combined bias (f32)
    o_ref  : (1, nb*L_out, C_out_total)   pooled, ReLU'd output (f32, channels-last)
    """
    w = w_ref[...]
    # One (nb*L_out, 128)@(128, C_out) matmul per pool phase; VPU max across phases.
    acc = jnp.dot(lhs_ref[0, 0], w, preferred_element_type=jnp.float32)
    for p in range(1, pool_size):
        acc = jnp.maximum(
            acc, jnp.dot(lhs_ref[0, p], w, preferred_element_type=jnp.float32))
    # max-pool commutes with (+bias, ReLU): bias is shared and ReLU is monotone.
    o_ref[0] = jnp.maximum(acc + b_ref[...], 0.0).astype(o_ref.dtype)


def conv_stage(x_cl, conv_ws, conv_bs, kernel_sizes, pool_size, *, nb,
               mxu_dtype=MXU_DTYPE):
    """Fused ConvBlock list, channels-last, batch-blocked.

    x_cl    : (N, L, C_in) float32
    returns : (N//nb, nb*(L//pool), sum_i C_out_i) float32  (flat batch blocks)
    """
    n, l, c_in = x_cl.shape
    k_max = max(kernel_sizes)
    pad_l_max = (k_max - 1) // 2
    pad_r_max = (k_max - 1) - pad_l_max
    l_out = l // pool_size
    kc = k_max * c_in
    kc_pad = max(128, ((kc + 127) // 128) * 128)      # lane-dense contraction depth
    c_out_total = sum(int(w.shape[0]) for w in conv_ws)

    # im2col (wrapper side): lhs[n, l, k*C_in + c] = x_pad[n, l + k, c]
    x_pad = jnp.pad(x_cl, ((0, 0), (pad_l_max, pad_r_max), (0, 0)))
    lhs = jnp.concatenate([x_pad[:, k:k + l, :] for k in range(k_max)], axis=-1)
    lhs = jnp.pad(lhs, ((0, 0), (0, 0), (0, kc_pad - kc)))
    # split rows into pool phases and flatten each batch block into the row dim:
    #   -> (N//nb, pool, nb*L_out, KC_pad)
    lhs = lhs[:, :l_out * pool_size, :].reshape(n, l_out, pool_size, kc_pad)
    lhs = jnp.transpose(lhs, (0, 2, 1, 3))                     # (N, pool, L_out, KC)
    lhs = lhs.reshape(n // nb, nb, pool_size, l_out, kc_pad)
    lhs = jnp.transpose(lhs, (0, 2, 1, 3, 4)).reshape(
        n // nb, pool_size, nb * l_out, kc_pad).astype(mxu_dtype)

    # Combined weight: every block's taps sit at its 'same'-aligned offset inside the
    # shared K_max window; unused taps stay zero, so one 128-deep matmul evaluates all
    # conv blocks and emits the channel-concatenated output directly.
    w_comb = jnp.zeros((kc_pad, c_out_total), jnp.float32)
    b_parts = []
    col = 0
    for w, b, k in zip(conv_ws, conv_bs, kernel_sizes):
        c_out_i = int(w.shape[0])
        shift = pad_l_max - (k - 1) // 2
        w_t = jnp.transpose(w, (2, 1, 0)).reshape(k * c_in, c_out_i)
        w_comb = w_comb.at[shift * c_in:shift * c_in + k * c_in,
                           col:col + c_out_i].set(w_t)
        b_parts.append(b)
        col += c_out_i
    w_comb = w_comb.astype(mxu_dtype)
    b_comb = jnp.concatenate(b_parts).reshape(1, c_out_total).astype(jnp.float32)

    nblk = n // nb
    return pl.pallas_call(
        functools.partial(_conv_pool_kernel, pool_size=pool_size),
        out_shape=jax.ShapeDtypeStruct((nblk, nb * l_out, c_out_total), jnp.float32),
        grid_spec=pltpu.PrefetchScalarGridSpec(
            num_scalar_prefetch=0,
            grid=(nblk,),
            in_specs=[
                pl.BlockSpec((1, pool_size, nb * l_out, kc_pad),
                             lambda i: (i, 0, 0, 0)),
                pl.BlockSpec((kc_pad, c_out_total), lambda i: (0, 0)),
                pl.BlockSpec((1, c_out_total), lambda i: (0, 0)),
            ],
            out_specs=pl.BlockSpec((1, nb * l_out, c_out_total), lambda i: (i, 0, 0)),
        ),
        compiler_params=pltpu.CompilerParams(dimension_semantics=("parallel",)),
    )(lhs, w_comb, b_comb)


# ---------------------------------------------------------------------------
# PositionalEncoding1D (wrapper-side constant; the add is fused into the trfm kernel)
# ---------------------------------------------------------------------------
def positional_encoding_1d(length, channels):
    ch = int(math.ceil(channels / 2) * 2)
    inv_freq = 1.0 / (10000.0 ** (jnp.arange(0, ch, 2, dtype=jnp.float32) / ch))
    ang = jnp.arange(length, dtype=jnp.float32)[:, None] * inv_freq[None, :]
    emb = jnp.concatenate([jnp.sin(ang), jnp.cos(ang)], axis=-1)
    return emb[:, :channels]


# ---------------------------------------------------------------------------
# Stage 2: nn.TransformerEncoderLayer (post-norm, ReLU FFN, eval-mode dropout)
# ---------------------------------------------------------------------------
def _trfm_encoder_kernel(x_ref, pos_ref, wqkv_ref, bqkv_ref, wo_ref, bo_ref,
                         g1_ref, be1_ref, w1_ref, b1_ref, w2_ref, b2_ref,
                         g2_ref, be2_ref, o_ref, *, nb, l, nhead, eps, mxu_dtype):
    """nb samples per grid step; row-parallel math on the flat (nb*l, E) slab."""
    e = wo_ref.shape[-1]
    hd = e // nhead
    scale = 1.0 / math.sqrt(hd)

    x = x_ref[0] + pos_ref[...]                                  # (nb*l, E) f32

    # Fused QKV projection: (nb*l, E) @ (E, 3E), bf16 operands, f32 accumulate.
    qkv = jnp.dot(x.astype(mxu_dtype), wqkv_ref[...],
                  preferred_element_type=jnp.float32) + bqkv_ref[...]

    # Per-sample / per-head attention (tiny 36x36 scores) in f32.
    attn_rows = []
    for s in range(nb):                                          # static batch block
        qkv_s = qkv[s * l:(s + 1) * l, :]                        # (l, 3E)
        head_outs = []
        for hh in range(nhead):                                  # static head loop
            q = qkv_s[:, hh * hd:(hh + 1) * hd]
            k = qkv_s[:, e + hh * hd:e + (hh + 1) * hd]
            v = qkv_s[:, 2 * e + hh * hd:2 * e + (hh + 1) * hd]
            sc = lax.dot_general(q, k, (((1,), (1,)), ((), ())),
                                 preferred_element_type=jnp.float32) * scale
            sc = sc - jnp.max(sc, axis=-1, keepdims=True)
            ex = jnp.exp(sc)
            p = ex * pl.reciprocal(jnp.sum(ex, axis=-1, keepdims=True), approx=True)
            head_outs.append(jnp.dot(p, v, preferred_element_type=jnp.float32))
        attn_rows.append(jnp.concatenate(head_outs, axis=-1))    # (l, E)
    attn = jnp.concatenate(attn_rows, axis=0)                    # (nb*l, E)

    # Fused output projection over the whole slab.
    attn = jnp.dot(attn.astype(mxu_dtype), wo_ref[...],
                   preferred_element_type=jnp.float32) + bo_ref[...]

    def _ln(v_, g, b_):
        mu = jnp.mean(v_, axis=-1, keepdims=True)
        c = v_ - mu
        var = jnp.mean(c * c, axis=-1, keepdims=True)
        return c * lax.rsqrt(var + eps) * g + b_

    h1 = _ln(x + attn, g1_ref[...], be1_ref[...])                # f32
    ff = jnp.dot(h1.astype(mxu_dtype), w1_ref[...],
                 preferred_element_type=jnp.float32) + b1_ref[...]
    ff = jnp.maximum(ff, 0.0)
    ff = jnp.dot(ff.astype(mxu_dtype), w2_ref[...],
                 preferred_element_type=jnp.float32) + b2_ref[...]
    o_ref[0] = _ln(h1 + ff, g2_ref[...], be2_ref[...]).astype(o_ref.dtype)


def transformer_stage(h, pos_tiled, in_proj_w, in_proj_b, out_proj_w, out_proj_b,
                      ln1_g, ln1_b, ffn_w1, ffn_b1, ffn_w2, ffn_b2,
                      ln2_g, ln2_b, *, nb, l, nhead, eps=1e-5, mxu_dtype=MXU_DTYPE):
    """h: (N//nb, nb*l, E) float32 flat batch blocks. Returns the same shape."""
    nblk, nl, e = h.shape
    dff = int(ffn_w1.shape[0])

    wqkv = in_proj_w.T.astype(mxu_dtype)                         # (E, 3E)
    bqkv = in_proj_b.reshape(1, 3 * e).astype(jnp.float32)
    wo = out_proj_w.T.astype(mxu_dtype)                          # (E, E)
    bo = out_proj_b.reshape(1, e).astype(jnp.float32)
    w1t = ffn_w1.T.astype(mxu_dtype)                             # (E, dff)
    b1 = ffn_b1.reshape(1, dff).astype(jnp.float32)
    w2t = ffn_w2.T.astype(mxu_dtype)                             # (dff, E)
    b2 = ffn_b2.reshape(1, e).astype(jnp.float32)
    g1, be1 = ln1_g.reshape(1, e), ln1_b.reshape(1, e)
    g2, be2 = ln2_g.reshape(1, e), ln2_b.reshape(1, e)

    const2 = lambda i: (0, 0)
    return pl.pallas_call(
        functools.partial(_trfm_encoder_kernel, nb=nb, l=l, nhead=nhead, eps=eps,
                          mxu_dtype=mxu_dtype),
        out_shape=jax.ShapeDtypeStruct((nblk, nl, e), jnp.float32),
        grid_spec=pltpu.PrefetchScalarGridSpec(
            num_scalar_prefetch=0,
            grid=(nblk,),
            in_specs=[
                pl.BlockSpec((1, nl, e), lambda i: (i, 0, 0)),
                pl.BlockSpec((nl, e), const2),
                pl.BlockSpec((e, 3 * e), const2),
                pl.BlockSpec((1, 3 * e), const2),
                pl.BlockSpec((e, e), const2),
                pl.BlockSpec((1, e), const2),
                pl.BlockSpec((1, e), const2),
                pl.BlockSpec((1, e), const2),
                pl.BlockSpec((e, dff), const2),
                pl.BlockSpec((1, dff), const2),
                pl.BlockSpec((dff, e), const2),
                pl.BlockSpec((1, e), const2),
                pl.BlockSpec((1, e), const2),
                pl.BlockSpec((1, e), const2),
            ],
            out_specs=pl.BlockSpec((1, nl, e), lambda i: (i, 0, 0)),
        ),
        compiler_params=pltpu.CompilerParams(dimension_semantics=("parallel",)),
    )(h, pos_tiled, wqkv, bqkv, wo, bo, g1, be1, w1t, b1, w2t, b2, g2, be2)


# ---------------------------------------------------------------------------
# Stage 3: FC head (Flatten -> Dropout[eval] -> Linear/ReLU x2 -> Linear(->1))
# ---------------------------------------------------------------------------
def _fc_head_kernel(x_ref, w1_ref, b1_ref, w2_ref, b2_ref, w3_ref, b3_ref, o_ref,
                    *, mxu_dtype):
    z = jnp.maximum(jnp.dot(x_ref[...], w1_ref[...],
                            preferred_element_type=jnp.float32) + b1_ref[...], 0.0)
    z = jnp.maximum(jnp.dot(z.astype(mxu_dtype), w2_ref[...],
                            preferred_element_type=jnp.float32) + b2_ref[...], 0.0)
    # final (hidden -> 1) projection as a lane reduction (avoids a 1-column matmul)
    y = jnp.sum(z * w3_ref[...], axis=-1, keepdims=True) + b3_ref[...]
    o_ref[...] = y.astype(o_ref.dtype)


def fc_head(h_flat, fc1_w, fc1_b, fc2_w, fc2_b, fc3_w, fc3_b, *,
            mxu_dtype=MXU_DTYPE):
    """h_flat: (N, L_out*E) float32. Returns (N, 1) float32."""
    n, f = h_flat.shape
    d1 = int(fc1_w.shape[0])
    d2 = int(fc2_w.shape[0])
    nb = _pick_fc_block(n)
    const2 = lambda i: (0, 0)
    return pl.pallas_call(
        functools.partial(_fc_head_kernel, mxu_dtype=mxu_dtype),
        out_shape=jax.ShapeDtypeStruct((n, 1), jnp.float32),
        grid_spec=pltpu.PrefetchScalarGridSpec(
            num_scalar_prefetch=0,
            grid=(n // nb,),
            in_specs=[
                pl.BlockSpec((nb, f), lambda i: (i, 0)),
                pl.BlockSpec((f, d1), const2),
                pl.BlockSpec((1, d1), const2),
                pl.BlockSpec((d1, d2), const2),
                pl.BlockSpec((1, d2), const2),
                pl.BlockSpec((1, d2), const2),
                pl.BlockSpec((1, 1), const2),
            ],
            out_specs=pl.BlockSpec((nb, 1), lambda i: (i, 0)),
        ),
        compiler_params=pltpu.CompilerParams(dimension_semantics=("parallel",)),
    )(h_flat.astype(mxu_dtype), fc1_w.T.astype(mxu_dtype),
      fc1_b.reshape(1, d1).astype(jnp.float32),
      fc2_w.T.astype(mxu_dtype), fc2_b.reshape(1, d2).astype(jnp.float32),
      fc3_w.reshape(1, d2).astype(jnp.float32), fc3_b.reshape(1, 1).astype(jnp.float32))


# ---------------------------------------------------------------------------
# Full DeepFamTrfm forward
# ---------------------------------------------------------------------------
def deepfam_trfm_forward(x, params, *, pool_size=3, nhead=4, mxu_dtype=MXU_DTYPE):
    """x: (N, L, 4) float32 — the DeepFamTrfm input (NLC; the PyTorch module's internal
    NCW / LND transposes are folded into the kernels' channels-last layouts)."""
    # TODO(synk): nn.Dropout layers (p=0.2 conv, p=0.1 transformer, p=0.5 fc) are
    # identity here (eval-mode forward); training-mode masking/scaling is omitted.
    n = x.shape[0]
    nb = _pick_block(n)                                          # shared conv/trfm block

    conv_out = conv_stage(x, params["conv_w"], params["conv_b"],
                          params["conv_kernel_sizes"], pool_size, nb=nb,
                          mxu_dtype=mxu_dtype)                   # (N//nb, nb*L_out, E)
    nblk, nl, e = conv_out.shape
    l_out = nl // nb

    pos = positional_encoding_1d(l_out, e)                       # (L_out, E)
    pos_tiled = jnp.tile(pos, (nb, 1))                           # (nb*L_out, E)

    h = transformer_stage(conv_out, pos_tiled,
                          params["in_proj_weight"], params["in_proj_bias"],
                          params["out_proj_weight"], params["out_proj_bias"],
                          params["ln1_g"], params["ln1_b"],
                          params["ffn_w1"], params["ffn_b1"],
                          params["ffn_w2"], params["ffn_b2"],
                          params["ln2_g"], params["ln2_b"],
                          nb=nb, l=l_out, nhead=nhead, mxu_dtype=mxu_dtype)

    h_flat = h.reshape(n, l_out * e)                             # row-major flatten
    y = fc_head(h_flat,
                params["fc1_w"], params["fc1_b"],
                params["fc2_w"], params["fc2_b"],
                params["fc3_w"], params["fc3_b"], mxu_dtype=mxu_dtype)
    return jnp.squeeze(y)


# ---------------------------------------------------------------------------
# Pure-JAX (XLA) reference of the same eval-mode forward (mirrors MXU-operand rounding)
# ---------------------------------------------------------------------------
def _reference_forward(x, params, *, pool_size=3, nhead=4, mxu_dtype=MXU_DTYPE):
    def rnd(a):                     # mirror bf16 MXU-operand rounding of the kernels
        return a.astype(mxu_dtype).astype(jnp.float32)

    def mm(a, b):
        return rnd(a) @ rnd(b)

    with jax.default_matmul_precision("float32"):
        n, l, _ = x.shape
        x_ncw = jnp.transpose(x, (0, 2, 1))
        outs = []
        for w, b in zip(params["conv_w"], params["conv_b"]):
            y = lax.conv_general_dilated(rnd(x_ncw), rnd(w), (1,), "SAME",
                                         dimension_numbers=("NCH", "OIH", "NCH"))
            y = jnp.maximum(y + b[None, :, None], 0.0)
            lo = l // pool_size
            y = y[:, :, :lo * pool_size].reshape(n, int(w.shape[0]), lo, pool_size).max(-1)
            outs.append(y)
        h = jnp.transpose(jnp.concatenate(outs, axis=1), (0, 2, 1))   # (N, L_out, E)
        lo, e = h.shape[1], h.shape[2]
        h = h + positional_encoding_1d(lo, e)[None]

        hd = e // nhead
        wi, bi = params["in_proj_weight"], params["in_proj_bias"]
        qkv = mm(h, wi.T) + bi
        q, k, v = qkv[..., :e], qkv[..., e:2 * e], qkv[..., 2 * e:]

        def _split(t):
            return jnp.transpose(t.reshape(n, lo, nhead, hd), (0, 2, 1, 3))

        qh, kh, vh = _split(q), _split(k), _split(v)
        s = jnp.einsum("bhld,bhmd->bhlm", qh, kh) / math.sqrt(hd)
        p = jax.nn.softmax(s, axis=-1)
        o = jnp.einsum("bhlm,bhmd->bhld", p, vh)
        o = jnp.transpose(o, (0, 2, 1, 3)).reshape(n, lo, e)
        attn = mm(o, params["out_proj_weight"].T) + params["out_proj_bias"]

        def _ln(v_, g, b_, eps=1e-5):
            mu = v_.mean(-1, keepdims=True)
            c = v_ - mu
            var = (c * c).mean(-1, keepdims=True)
            return c * lax.rsqrt(var + eps) * g + b_

        h1 = _ln(h + attn, params["ln1_g"], params["ln1_b"])
        ff = jnp.maximum(mm(h1, params["ffn_w1"].T) + params["ffn_b1"], 0.0)
        ff = mm(ff, params["ffn_w2"].T) + params["ffn_b2"]
        h2 = _ln(h1 + ff, params["ln2_g"], params["ln2_b"])

        z = h2.reshape(n, -1)
        z = jnp.maximum(mm(z, params["fc1_w"].T) + params["fc1_b"], 0.0)
        z = jnp.maximum(mm(z, params["fc2_w"].T) + params["fc2_b"], 0.0)
        z = z @ params["fc3_w"].T + params["fc3_b"]
        return jnp.squeeze(z)


if __name__ == "__main__":
    # Shapes implied by the module: DeepFamTrfm hard-codes the sequence length 110 via
    # pool_out_len = int(1 + (110 - pool_size) / pool_size); input has 4 channels.
    N, L, C_IN = 4, 110, 4
    CONV_KERNELS = [10, 15]
    CONV_OUT = 320
    POOL = 3
    NHEAD = 4
    DFF = 512
    FC_HIDDEN = 64
    L_OUT = L // POOL                      # 36 == int(1 + (110 - 3) / 3)
    E = CONV_OUT
    c_each = CONV_OUT // len(CONV_KERNELS)

    key = jax.random.PRNGKey(0)
    keys = iter(jax.random.split(key, 32))

    def uinit(shape, fan_in):
        bound = 1.0 / math.sqrt(fan_in)
        return jax.random.uniform(next(keys), shape, jnp.float32, -bound, bound)

    params = {
        "conv_kernel_sizes": CONV_KERNELS,
        "conv_w": [uinit((c_each, C_IN, k), C_IN * k) for k in CONV_KERNELS],
        "conv_b": [uinit((c_each,), C_IN * k) for k in CONV_KERNELS],
        "in_proj_weight": uinit((3 * E, E), E),
        "in_proj_bias": uinit((3 * E,), E),
        "out_proj_weight": uinit((E, E), E),
        "out_proj_bias": uinit((E,), E),
        "ln1_g": jnp.ones((E,), jnp.float32),
        "ln1_b": jnp.zeros((E,), jnp.float32),
        "ffn_w1": uinit((DFF, E), E),
        "ffn_b1": uinit((DFF,), E),
        "ffn_w2": uinit((E, DFF), DFF),
        "ffn_b2": uinit((E,), DFF),
        "ln2_g": jnp.ones((E,), jnp.float32),
        "ln2_b": jnp.zeros((E,), jnp.float32),
        "fc1_w": uinit((FC_HIDDEN, E * L_OUT), E * L_OUT),
        "fc1_b": uinit((FC_HIDDEN,), E * L_OUT),
        "fc2_w": uinit((FC_HIDDEN, FC_HIDDEN), FC_HIDDEN),
        "fc2_b": uinit((FC_HIDDEN,), FC_HIDDEN),
        "fc3_w": uinit((1, FC_HIDDEN), FC_HIDDEN),
        "fc3_b": uinit((1,), FC_HIDDEN),
    }
    x = jax.random.normal(next(keys), (N, L, C_IN), jnp.float32)

    y = deepfam_trfm_forward(x, params, pool_size=POOL, nhead=NHEAD)
    y = jax.block_until_ready(y)

    y_ref = _reference_forward(x, params, pool_size=POOL, nhead=NHEAD)
    assert y.shape == (N,), y.shape
    max_err = float(jnp.max(jnp.abs(y - y_ref)))
    assert jnp.allclose(y, y_ref, atol=1e-2, rtol=1e-2), max_err
    print("KERNEL_OK")
</pallas_src>

<mosaic_0001>
module attributes {stable_mosaic.version = 11 : i64} {
  func.func @_conv_pool_kernel(%arg0: i32, %arg1: memref<1x3x72x128xbf16, #tpu.memory_space<vmem>>, %arg2: memref<128x320xbf16, #tpu.memory_space<vmem>>, %arg3: memref<1x320xf32, #tpu.memory_space<vmem>>, %arg4: memref<1x72x320xf32, #tpu.memory_space<vmem>>) attributes {dimension_semantics = [#tpu.dimension_semantics<parallel>], iteration_bounds = array<i64: 2>, scalar_prefetch = 0 : i64, scratch_operands = 0 : i64, tpu.core_type = #tpu.core_type<tc>, window_params = [{transform_indices = @transform_0, window_bounds = array<i64: 1, 3, 72, 128>}, {pipeline_mode = #tpu.pipeline_mode<synchronous>, transform_indices = @transform_1, window_bounds = array<i64: 128, 320>}, {pipeline_mode = #tpu.pipeline_mode<synchronous>, transform_indices = @transform_2, window_bounds = array<i64: 1, 320>}, {transform_indices = @transform_3, window_bounds = array<i64: 1, 72, 320>}]} {
    %c0 = arith.constant 0 : index
    %c0_0 = arith.constant 0 : index
    %0 = vector.load %arg2[%c0, %c0_0] : memref<128x320xbf16, #tpu.memory_space<vmem>>, vector<128x320xbf16>
    %c0_1 = arith.constant 0 : index
    %c0_2 = arith.constant 0 : index
    %c0_3 = arith.constant 0 : index
    %c0_4 = arith.constant 0 : index
    %1 = vector.load %arg1[%c0_1, %c0_2, %c0_3, %c0_4] : memref<1x3x72x128xbf16, #tpu.memory_space<vmem>>, vector<1x1x72x128xbf16>
    %2 = vector.shape_cast %1 : vector<1x1x72x128xbf16> to vector<72x128xbf16>
    %cst = arith.constant dense<0.000000e+00> : vector<72x320xf32>
    %3 = tpu.matmul %2, %0, %cst {dimension_numbers = #tpu.dot_dimension_numbers<[1], [0], [0], [1], [0, 0, 1, 1], [], []>} : vector<72x128xbf16>, vector<128x320xbf16>, vector<72x320xf32> -> vector<72x320xf32>
    %c0_5 = arith.constant 0 : index
    %c1 = arith.constant 1 : index
    %c0_6 = arith.constant 0 : index
    %c0_7 = arith.constant 0 : index
    %4 = vector.load %arg1[%c0_5, %c1, %c0_6, %c0_7] : memref<1x3x72x128xbf16, #tpu.memory_space<vmem>>, vector<1x1x72x128xbf16>
    %5 = vector.shape_cast %4 : vector<1x1x72x128xbf16> to vector<72x128xbf16>
    %cst_8 = arith.constant dense<0.000000e+00> : vector<72x320xf32>
    %6 = tpu.matmul %5, %0, %cst_8 {dimension_numbers = #tpu.dot_dimension_numbers<[1], [0], [0], [1], [0, 0, 1, 1], [], []>} : vector<72x128xbf16>, vector<128x320xbf16>, vector<72x320xf32> -> vector<72x320xf32>
    %7 = arith.maximumf %3, %6 : vector<72x320xf32>
    %c0_9 = arith.constant 0 : index
    %c2 = arith.constant 2 : index
    %c0_10 = arith.constant 0 : index
    %c0_11 = arith.constant 0 : index
    %8 = vector.load %arg1[%c0_9, %c2, %c0_10, %c0_11] : memref<1x3x72x128xbf16, #tpu.memory_space<vmem>>, vector<1x1x72x128xbf16>
    %9 = vector.shape_cast %8 : vector<1x1x72x128xbf16> to vector<72x128xbf16>
    %cst_12 = arith.constant dense<0.000000e+00> : vector<72x320xf32>
    %10 = tpu.matmul %9, %0, %cst_12 {dimension_numbers = #tpu.dot_dimension_numbers<[1], [0], [0], [1], [0, 0, 1, 1], [], []>} : vector<72x128xbf16>, vector<128x320xbf16>, vector<72x320xf32> -> vector<72x320xf32>
    %11 = arith.maximumf %7, %10 : vector<72x320xf32>
    %c0_13 = arith.constant 0 : index
    %c0_14 = arith.constant 0 : index
    %12 = vector.load %arg3[%c0_13, %c0_14] : memref<1x320xf32, #tpu.memory_space<vmem>>, vector<1x320xf32>
    %13 = vector.broadcast %12 : vector<1x320xf32> to vector<72x320xf32>
    %14 = arith.addf %11, %13 : vector<72x320xf32>
    %cst_15 = arith.constant 0.000000e+00 : f32
    %15 = vector.broadcast %cst_15 : f32 to vector<72x320xf32>
    %16 = arith.maximumf %14, %15 : vector<72x320xf32>
    %c0_16 = arith.constant 0 : index
    %c0_17 = arith.constant 0 : index
    %c0_18 = arith.constant 0 : index
    %17 = vector.load %arg4[%c0_16, %c0_17, %c0_18] : memref<1x72x320xf32, #tpu.memory_space<vmem>>, vector<1x72x320xf32>
    %18 = vector.shape_cast %17 : vector<1x72x320xf32> to vector<72x320xf32>
    %19 = vector.shape_cast %16 : vector<72x320xf32> to vector<1x72x320xf32>
    tpu.vector_store %arg4[%c0_16, %c0_17, %c0_18], %19 {strides = array<i32>} : memref<1x72x320xf32, #tpu.memory_space<vmem>>, vector<1x72x320xf32>,
    return
  }
  func.func @transform_0(%arg0: i32) -> (i32, i32, i32, i32) {
    %c0_i32 = arith.constant 0 : i32
    %c0_i32_0 = arith.constant 0 : i32
    %c0_i32_1 = arith.constant 0 : i32
    %c0_i32_2 = arith.constant 0 : i32
    return %arg0, %c0_i32, %c0_i32_0, %c0_i32_1 : i32, i32, i32, i32
  }
  func.func @transform_1(%arg0: i32) -> (i32, i32) {
    %c0_i32 = arith.constant 0 : i32
    %c0_i32_0 = arith.constant 0 : i32
    %c0_i32_1 = arith.constant 0 : i32
    return %c0_i32, %c0_i32_0 : i32, i32
  }
  func.func @transform_2(%arg0: i32) -> (i32, i32) {
    %c0_i32 = arith.constant 0 : i32
    %c0_i32_0 = arith.constant 0 : i32
    %c0_i32_1 = arith.constant 0 : i32
    return %c0_i32, %c0_i32_0 : i32, i32
  }
  func.func @transform_3(%arg0: i32) -> (i32, i32, i32) {
    %c0_i32 = arith.constant 0 : i32
    %c0_i32_0 = arith.constant 0 : i32
    %c0_i32_1 = arith.constant 0 : i32
    return %arg0, %c0_i32, %c0_i32_0 : i32, i32, i32
  }
}

</mosaic_0001>

<llo_original>
// kernel: tpu_custom_call.1
$region0: #{tpu_custom_call.1}
  #allocation0 [shape = 'u32[]', space=smem, size = 0x4, offset = 0x4, fixed_abs, tag = 'smem constant byte address 0x4 - core index']
  #allocation1 [shape = 'u32[144,128]{1,0:T(1,128)}', space=vmem, size = 0x12000, scoped, tag = 'internal scratch']
  %s0 = inlined_call_operand.vmem [shape: bf16[2,3,72,128], index: 0, kind: input, shape index: {}]
  %s1 = inlined_call_operand.vmem [shape: bf16[128,320], index: 1, kind: input, shape index: {}]
  %s2 = inlined_call_operand.vmem [shape: f32[1,320], index: 2, kind: input, shape index: {}]
  %s3 = inlined_call_operand.hbm [shape: f32[2,72,320], index: 3, kind: output, shape index: {}]
  %s4 = sld [smem:[#allocation0]]
  $region45: #{tpu_custom_call.1} parent=0
    _
  %s6 = ssub.s32 1, %s4
  %s7 = scalar_select 0, %s6, %s4
  $region1: #{tpu_custom_call.1} parent=0
    #allocation2 [shape = 'u8[221184]{0}', space=vmem, size = 0x36000, scoped, tag = 'output window, operand 0']
    #allocation3 [shape = 's32[2]{0}', space=sflag, size = 0x8, scoped, tag = 'scoped memory for tpu_custom_call.1']
    %8 = vsyncpa [#allocation3], 0
    %s9 = scalar_lea.sflag [#allocation3], 1
    %10 = vsyncpa %s9, 0
    loop: start=0, step=1, limit=4
    $region2: #{tpu_custom_call.1} parent=1 // loop_pre_header
      _
    $region3: #{tpu_custom_call.1} parent=1 // loop_header
      %s12 = sphi 0, %s16
      %p13 = scmp.ge.s32.totalorder %s12, 4
      %s22 = sphi 0, %s24
      %s25 = sphi 0, %s22
      %s26 = sphi 0, %s25
      %s42 = sphi 0, %s26
      %s46 = sphi 0, %s46
      %s48 = sphi 0, %s46
      %s49 = sphi 0, %s48
      %s63 = sphi 0, %s49
      %s67 = sphi 0, %s67
      %s69 = sphi 0, %s67
      %s70 = sphi 0, %s69
      %s84 = sphi 0, %s70
      %s90 = sphi 0, %s92
      %s93 = sphi 0, %s90
      %s94 = sphi 0, %s93
      %s110 = sphi 0, %s94
    $region4: #{tpu_custom_call.1} parent=1 // loop_header_branch
      %15 = sbr.rel (%p13) target = $region8
    $region5: #{tpu_custom_call.1} parent=1 // loop_body
      %s17 = ssub.s32 %s12, 1
      %s18 = ssub.s32 %s12, 2
      %s19 = sadd.s32 %s12, 1
      %s20 = ssub.s32 %s12, %s19
      %p21 = scmp.eq.s32.totalorder %s20, 0
      %s23 = sadd.s32 %s22, 1
      %s24 = scalar_select %p21, %s22, %s23
      %p27 = pneg %p21
      %p28 = scmp.eq.s32.totalorder %s12, 1
      %p29 = por %p27, %p28
      %p30 = scmp.ne.s32.totalorder %s22, %s25
      %p31 = scmp.eq.s32.totalorder %s12, 0
      %p32 = por %p30, %p31
      %p33 = scmp.ne.s32.totalorder %s22, %s25
      %p34 = scmp.eq.s32.totalorder %s17, 1
      %p35 = por %p33, %p34
      %p36 = scmp.ne.s32.totalorder %s25, %s26
      %p37 = scmp.eq.s32.totalorder %s17, 0
      %p38 = por %p36, %p37
      %p39 = scmp.ne.s32.totalorder %s25, %s26
      %p40 = scmp.eq.s32.totalorder %s18, 1
      %p41 = por %p39, %p40
      %p43 = scmp.ne.s32.totalorder %s26, %s42
      %p44 = scmp.eq.s32.totalorder %s18, 0
      %p45 = por %p43, %p44
      %s47 = sadd.s32 %s46, 1
      %p50 = scmp.eq.s32.totalorder %s12, 1
      %p51 = scmp.ne.s32.totalorder %s46, %s48
      %p52 = scmp.eq.s32.totalorder %s12, 0
      %p53 = por %p51, %p52
      %p54 = scmp.ne.s32.totalorder %s46, %s48
      %p55 = scmp.eq.s32.totalorder %s17, 1
      %p56 = por %p54, %p55
      %p57 = scmp.ne.s32.totalorder %s48, %s49
      %p58 = scmp.eq.s32.totalorder %s17, 0
      %p59 = por %p57, %p58
      %p60 = scmp.ne.s32.totalorder %s48, %s49
      %p61 = scmp.eq.s32.totalorder %s18, 1
      %p62 = por %p60, %p61
      %p64 = scmp.ne.s32.totalorder %s49, %s63
      %p65 = scmp.eq.s32.totalorder %s18, 0
      %p66 = por %p64, %p65
      %s68 = sadd.s32 %s67, 1
      %p71 = scmp.eq.s32.totalorder %s12, 1
      %p72 = scmp.ne.s32.totalorder %s67, %s69
      %p73 = scmp.eq.s32.totalorder %s12, 0
      %p74 = por %p72, %p73
      %p75 = scmp.ne.s32.totalorder %s67, %s69
      %p76 = scmp.eq.s32.totalorder %s17, 1
      %p77 = por %p75, %p76
      %p78 = scmp.ne.s32.totalorder %s69, %s70
      %p79 = scmp.eq.s32.totalorder %s17, 0
      %p80 = por %p78, %p79
      %p81 = scmp.ne.s32.totalorder %s69, %s70
      %p82 = scmp.eq.s32.totalorder %s18, 1
      %p83 = por %p81, %p82
      %p85 = scmp.ne.s32.totalorder %s70, %s84
      %p86 = scmp.eq.s32.totalorder %s18, 0
      %p87 = por %p85, %p86
      %s88 = ssub.s32 %s12, %s19
      %p89 = scmp.eq.s32.totalorder %s88, 0
      %s91 = sadd.s32 %s90, 1
      %s92 = scalar_select %p89, %s90, %s91
      %p95 = pneg %p89
      %p96 = scmp.eq.s32.totalorder %s12, 1
      %p97 = por %p95, %p96
      %p98 = scmp.ne.s32.totalorder %s90, %s93
      %p99 = scmp.eq.s32.totalorder %s12, 0
      %p100 = por %p98, %p99
      %p101 = scmp.ne.s32.totalorder %s90, %s93
      %p102 = scmp.eq.s32.totalorder %s17, 1
      %p103 = por %p101, %p102
      %p104 = scmp.ne.s32.totalorder %s93, %s94
      %p105 = scmp.eq.s32.totalorder %s17, 0
      %p106 = por %p104, %p105
      %p107 = scmp.ne.s32.totalorder %s93, %s94
      %p108 = scmp.eq.s32.totalorder %s18, 1
      %p109 = por %p107, %p108
      %p111 = scmp.ne.s32.totalorder %s94, %s110
      %p112 = scmp.eq.s32.totalorder %s18, 0
      %p113 = por %p111, %p112
      %p114 = scmp.le.s32.totalorder 1, %s12
      %p115 = scmp.lt.s32.totalorder %s12, 3
      %p116 = pnand %p114, %p115
      %p117 = pneg %p116
      // Predicated region
      $region9: #{tpu_custom_call.1} parent=5 // pred_check
        _
      $region10: #{tpu_custom_call.1} parent=5 // pred_check_branch
        %119 = sbr.rel (%p116) target = $region12
      $region11: #{tpu_custom_call.1} parent=5 // pred_region
        %s120 = ssub.s32 %s12, 1
        // Predicated region
        $region13: #{tpu_custom_call.1} parent=11 // pred_check
          %p121 = pneg %p59
        $region14: #{tpu_custom_call.1} parent=11 // pred_check_branch
          %123 = sbr.rel (%p121) target = $region16
        $region15: #{tpu_custom_call.1} parent=11 // pred_region
          _
        $region16: #{tpu_custom_call.1} parent=11 // pred_fallthru
          _
        // Predicated region
        $region17: #{tpu_custom_call.1} parent=11 // pred_check
          %p124 = pneg %p80
        $region18: #{tpu_custom_call.1} parent=11 // pred_check_branch
          %126 = sbr.rel (%p124) target = $region20
        $region19: #{tpu_custom_call.1} parent=11 // pred_region
          _
        $region20: #{tpu_custom_call.1} parent=11 // pred_fallthru
          _
      $region12: #{tpu_custom_call.1} parent=5 // pred_fallthru
        _
      %p127 = scmp.lt.s32.totalorder %s12, 2
      // Predicated region
      $region21: #{tpu_custom_call.1} parent=5 // pred_check
        %p128 = pneg %p127
      $region22: #{tpu_custom_call.1} parent=5 // pred_check_branch
        %130 = sbr.rel (%p128) target = $region24
      $region23: #{tpu_custom_call.1} parent=5 // pred_region
        // Predicated region
        $region25: #{tpu_custom_call.1} parent=23 // pred_check
          %p131 = pneg %p32
        $region26: #{tpu_custom_call.1} parent=23 // pred_check_branch
          %133 = sbr.rel (%p131) target = $region28
        $region27: #{tpu_custom_call.1} parent=23 // pred_region
          %p134 = scmp.lt.s32.totalorder %s12, 1
          %s135 = scalar_select %p134, %s12, 1
          %s136 = smul.addr %s135, 27
          %s137 = smul.addr %s136, 4
          %s138 = scalar_lea.vmem %s0, %s137
        $region28: #{tpu_custom_call.1} parent=23 // pred_fallthru
          _
      $region24: #{tpu_custom_call.1} parent=5 // pred_fallthru
        _
      %p139 = scmp.le.s32.totalorder 1, %s12
      %p140 = scmp.lt.s32.totalorder %s12, 3
      %p141 = pnand %p139, %p140
      %p142 = pneg %p141
      // Predicated region
      $region29: #{tpu_custom_call.1} parent=5 // pred_check
        _
      $region30: #{tpu_custom_call.1} parent=5 // pred_check_branch
        %144 = sbr.rel (%p141) target = $region32
      $region31: #{tpu_custom_call.1} parent=5 // pred_region
        %s145 = ssub.s32 %s12, 1
        %p146 = scmp.lt.s32.totalorder %s17, 1
        %s147 = scalar_select %p146, %s17, 1
        %s148 = smul.addr %s147, 27
        %s149 = smul.addr %s148, 4
        %s150 = scalar_lea.vmem %s0, %s149
        %p151 = pneg %p38
        %p152 = pneg %p35
        %p153 = pneg %p59
        %p154 = pneg %p56
        %p155 = pneg %p80
        %p156 = pneg %p77
        %p157 = pneg %p106
        %p158 = pneg %p103
        %s159 = sand.u32 %s93, 1
        %s160 = scalar_lea.sflag [#allocation3], %s159
        %s161 = sand.u32 %s93, 1
        %s162 = smul.addr %s161, 216
        %s163 = scalar_lea.vmem [#allocation2], %s162
        %p164 = scmp.lt.s32.totalorder %s17, 1
        %s165 = scalar_select %p164, %s17, 1
        %s166 = smul.addr %s165, 27
        %s167 = smul.addr %s166, 4
        %s168 = scalar_lea.vmem %s0, %s167
        %v170 = vld [vmem:[%s1] sm:$0xff]
        %v171 = vld [vmem:[%s1 + $0x8] sm:$0xf]
        %v172 = vld [vmem:[%s1 + $0xc] sm:$0xff]
        %v173 = vld [vmem:[%s1 + $0x14] sm:$0xf]
        %v174 = vld [vmem:[%s1 + $0x18] sm:$0xff]
        %v175 = vld [vmem:[%s1 + $0x20] sm:$0xf]
        %v176 = vld [vmem:[%s1 + $0x24] sm:$0xff]
        %v177 = vld [vmem:[%s1 + $0x2c] sm:$0xf]
        %v178 = vld [vmem:[%s1 + $0x30] sm:$0xff]
        %v179 = vld [vmem:[%s1 + $0x38] sm:$0xf]
        %v180 = vld [vmem:[%s1 + $0x3c] sm:$0xff]
        %v181 = vld [vmem:[%s1 + $0x44] sm:$0xf]
        %v182 = vld [vmem:[%s1 + $0x48] sm:$0xff]
        %v183 = vld [vmem:[%s1 + $0x50] sm:$0xf]
        %v184 = vld [vmem:[%s1 + $0x54] sm:$0xff]
        %v185 = vld [vmem:[%s1 + $0x5c] sm:$0xf]
        %v186 = vld [vmem:[%s1 + $0x60] sm:$0xff]
        %v187 = vld [vmem:[%s1 + $0x68] sm:$0xf]
        %v188 = vld [vmem:[%s1 + $0x6c] sm:$0xff]
        %v189 = vld [vmem:[%s1 + $0x74] sm:$0xf]
        %v190 = vld [vmem:[%s1 + $0x78] sm:$0xff]
        %v191 = vld [vmem:[%s1 + $0x80] sm:$0xf]
        %v192 = vld [vmem:[%s1 + $0x84] sm:$0xff]
        %v193 = vld [vmem:[%s1 + $0x8c] sm:$0xf]
        %v194 = vld [vmem:[%s1 + $0x90] sm:$0xff]
        %v195 = vld [vmem:[%s1 + $0x98] sm:$0xf]
        %v196 = vld [vmem:[%s1 + $0x9c] sm:$0xff]
        %v197 = vld [vmem:[%s1 + $0xa4] sm:$0xf]
        %v198 = vld [vmem:[%s1 + $0xa8] sm:$0xff]
        %v199 = vld [vmem:[%s1 + $0xb0] sm:$0xf]
        %v200 = vld [vmem:[%s1 + $0xb4] sm:$0xff]
        %v201 = vld [vmem:[%s1 + $0xbc] sm:$0xf]
        %v202 = vld [vmem:[%s168] sm:$0xf]
        %v203 = vld [vmem:[%s168 + $0x4] sm:$0xf]
        %v204 = vld [vmem:[%s168 + $0x8] sm:$0xf]
        %v205 = vld [vmem:[%s168 + $0xc] sm:$0xf]
        %v206 = vld [vmem:[%s168 + $0x10] sm:$0xf]
        %v207 = vld [vmem:[%s168 + $0x14] sm:$0xf]
        %v208 = vld [vmem:[%s168 + $0x18] sm:$0xf]
        %v209 = vld [vmem:[%s168 + $0x1c] sm:$0xf]
        %v210 = vld [vmem:[%s168 + $0x20] sm:$0xf]
        %v220 = vunpack.c.l.b16 %v202
        %v221 = vunpack.c.l.b16 %v203
        %v222 = vunpack.c.l.b16 %v204
        %v223 = vunpack.c.l.b16 %v205
        %v224 = vunpack.c.l.b16 %v206
        %v225 = vunpack.c.l.b16 %v207
        %v226 = vunpack.c.l.b16 %v208
        %v227 = vunpack.c.l.b16 %v209
        %v228 = vunpack.c.l.b16 %v210
        %v229 = vpack.c.b16 %v221, %v220
        %v230 = vpack.c.b16 %v223, %v222
        %v231 = vpack.c.b16 %v225, %v224
        %v232 = vpack.c.b16 %v227, %v226
        %v233 = vpack.c.b16 %v228, %v228
        %v271 = vunpack.c.l.b16 %v170
        %v272 = vunpack.c.h.b16 %v170
        %v273 = vunpack.c.l.b16 %v171
        %v274 = vunpack.c.l.b16 %v172
        %v275 = vunpack.c.h.b16 %v172
        %v276 = vunpack.c.l.b16 %v173
        %v277 = vunpack.c.l.b16 %v174
        %v278 = vunpack.c.h.b16 %v174
        %v279 = vunpack.c.l.b16 %v175
        %v280 = vunpack.c.l.b16 %v176
        %v281 = vunpack.c.h.b16 %v176
        %v282 = vunpack.c.l.b16 %v177
        %v283 = vunpack.c.l.b16 %v178
        %v284 = vunpack.c.h.b16 %v178
        %v285 = vunpack.c.l.b16 %v179
        %v286 = vunpack.c.l.b16 %v180
        %v287 = vunpack.c.h.b16 %v180
        %v288 = vunpack.c.l.b16 %v181
        %v289 = vunpack.c.l.b16 %v182
        %v290 = vunpack.c.h.b16 %v182
        %v291 = vunpack.c.l.b16 %v183
        %v292 = vunpack.c.l.b16 %v184
        %v293 = vunpack.c.h.b16 %v184
        %v294 = vunpack.c.l.b16 %v185
        %v295 = vunpack.c.l.b16 %v186
        %v296 = vunpack.c.h.b16 %v186
        %v297 = vunpack.c.l.b16 %v187
        %v298 = vunpack.c.l.b16 %v188
        %v299 = vunpack.c.h.b16 %v188
        %v300 = vunpack.c.l.b16 %v189
        %v301 = vunpack.c.l.b16 %v190
        %v302 = vunpack.c.h.b16 %v190
        %v303 = vunpack.c.l.b16 %v191
        %v304 = vunpack.c.l.b16 %v192
        %v305 = vunpack.c.h.b16 %v192
        %v306 = vunpack.c.l.b16 %v193
        %v307 = vunpack.c.l.b16 %v194
        %v308 = vunpack.c.h.b16 %v194
        %v309 = vunpack.c.l.b16 %v195
        %v310 = vunpack.c.l.b16 %v196
        %v311 = vunpack.c.h.b16 %v196
        %v312 = vunpack.c.l.b16 %v197
        %v313 = vunpack.c.l.b16 %v198
        %v314 = vunpack.c.h.b16 %v198
        %v315 = vunpack.c.l.b16 %v199
        %v316 = vunpack.c.l.b16 %v200
        %v317 = vunpack.c.h.b16 %v200
        %v318 = vunpack.c.l.b16 %v201
        %v319 = vpack.c.b16 %v274, %v271
        %v320 = vpack.c.b16 %v275, %v272
        %v321 = vpack.c.b16 %v276, %v273
        %v322 = vpack.c.b16 %v280, %v277
        %v323 = vpack.c.b16 %v281, %v278
        %v324 = vpack.c.b16 %v282, %v279
        %v325 = vpack.c.b16 %v286, %v283
        %v326 = vpack.c.b16 %v287, %v284
        %v327 = vpack.c.b16 %v288, %v285
        %v328 = vpack.c.b16 %v292, %v289
        %v329 = vpack.c.b16 %v293, %v290
        %v330 = vpack.c.b16 %v294, %v291
        %v331 = vpack.c.b16 %v298, %v295
        %v332 = vpack.c.b16 %v299, %v296
        %v333 = vpack.c.b16 %v300, %v297
        %v334 = vpack.c.b16 %v304, %v301
        %v335 = vpack.c.b16 %v305, %v302
        %v336 = vpack.c.b16 %v306, %v303
        %v337 = vpack.c.b16 %v310, %v307
        %v338 = vpack.c.b16 %v311, %v308
        %v339 = vpack.c.b16 %v312, %v309
        %v340 = vpack.c.b16 %v316, %v313
        %v341 = vpack.c.b16 %v317, %v314
        %v342 = vpack.c.b16 %v318, %v315
        %367 = vmatprep.subr.bf16.mxu0 %v320
        %368 = vmatpush1.bf16.msra.mxu0 %v319
        %369 = vmatprep.subr.bf16.mxu0 %v323
        %370 = vmatpush1.bf16.msra.mxu0 %v322
        %371 = vmatprep.subr.bf16.mxu0 %v326
        %372 = vmatpush1.bf16.msra.mxu0 %v325
        %373 = vmatprep.subr.bf16.mxu0 %v329
        %374 = vmatpush1.bf16.msra.mxu0 %v328
        %375 = vmatprep.subr.bf16.mxu0 %v332
        %376 = vmatpush1.bf16.msra.mxu0 %v331
        %377 = vmatprep.subr.bf16.mxu0 %v335
        %378 = vmatpush1.bf16.msra.mxu0 %v334
        %379 = vmatprep.subr.bf16.mxu0 %v338
        %380 = vmatpush1.bf16.msra.mxu0 %v337
        %381 = vmatprep.subr.bf16.mxu0 %v341
        %382 = vmatpush1.bf16.msra.mxu0 %v340
        %383 = vmatprep.subr.bf16.mxu0 0
        %384 = vmatpush1.bf16.msra.mxu0 0
        %385 = vmatprep.subr.bf16.mxu0 0
        %386 = vmatpush1.bf16.msra.mxu0 0
        %387 = vmatprep.subr.bf16.mxu0 0
        %388 = vmatpush1.bf16.msra.mxu0 0
        %389 = vmatprep.subr.bf16.mxu0 0
        %390 = vmatpush1.bf16.msra.mxu0 0
        %391 = vmatprep.subr.bf16.mxu0 0
        %392 = vmatpush1.bf16.msra.mxu0 0
        %393 = vmatprep.subr.bf16.mxu0 0
        %394 = vmatpush1.bf16.msra.mxu0 0
        %395 = vmatprep.subr.bf16.mxu0 0
        %396 = vmatpush1.bf16.msra.mxu0 0
        %397 = vmatprep.subr.bf16.mxu0 0
        %398 = vmatpush1.bf16.msra.mxu0 0
        %399 = vmatprep.mubr.bf16.mxu0 0
        %400 = vmatmul.mubr.bf16.gmra.mrb[0].mxu0 %v229
        %v401 = vpop.f32.mrb[0].mxu0
        %v402 = vadd.f32 0.0, %v401
        %v403 = vpop.f32.mrb[0].mxu0
        %v404 = vadd.f32 0.0, %v403
        %v405 = vpop.f32.mrb[0].mxu0
        %v406 = vadd.f32 0.0, %v405
        %v407 = vpop.f32.mrb[0].mxu0
        %v408 = vadd.f32 0.0, %v407
        %409 = vmatprep.mubr.bf16.mxu0 0
        %410 = vmatmul.mubr.bf16.gmra.mrb[0].mxu0 %v230
        %v411 = vpop.f32.mrb[0].mxu0
        %v412 = vadd.f32 0.0, %v411
        %v413 = vpop.f32.mrb[0].mxu0
        %v414 = vadd.f32 0.0, %v413
        %v415 = vpop.f32.mrb[0].mxu0
        %v416 = vadd.f32 0.0, %v415
        %v417 = vpop.f32.mrb[0].mxu0
        %v418 = vadd.f32 0.0, %v417
        %419 = vmatprep.mubr.bf16.mxu0 0
        %420 = vmatmul.mubr.bf16.gmra.mrb[0].mxu0 %v231
        %v421 = vpop.f32.mrb[0].mxu0
        %v422 = vadd.f32 0.0, %v421
        %v423 = vpop.f32.mrb[0].mxu0
        %v424 = vadd.f32 0.0, %v423
        %v425 = vpop.f32.mrb[0].mxu0
        %v426 = vadd.f32 0.0, %v425
        %v427 = vpop.f32.mrb[0].mxu0
        %v428 = vadd.f32 0.0, %v427
        %429 = vmatprep.mubr.bf16.mxu0 0
        %430 = vmatmul.mubr.bf16.gmra.mrb[0].mxu0 %v232
        %v431 = vpop.f32.mrb[0].mxu0
        %v432 = vadd.f32 0.0, %v431
        %v433 = vpop.f32.mrb[0].mxu0
        %v434 = vadd.f32 0.0, %v433
        %v435 = vpop.f32.mrb[0].mxu0
        %v436 = vadd.f32 0.0, %v435
        %v437 = vpop.f32.mrb[0].mxu0
        %v438 = vadd.f32 0.0, %v437
        %439 = vmatprep.mubr.bf16.mxu0 0
        %440 = vmatmul.mubr.bf16.gmra.mrb[0].mxu0 %v233
        %v441 = vpop.f32.mrb[0].mxu0
        %v442 = vadd.f32 0.0, %v441
        %v443 = vpop.f32.mrb[0].mxu0
        %v444 = vadd.f32 0.0, %v443
        %v445 = vpop.f32.mrb[0].mxu0
        %v446 = vpop.f32.mrb[0].mxu0
        %447 = vdwg.mxu0
        %448 = vmatprep.subr.bf16.mxu0 0
        %449 = vmatpush1.bf16.msra.mxu0 %v321
        %450 = vmatprep.subr.bf16.mxu0 0
        %451 = vmatpush1.bf16.msra.mxu0 %v324
        %452 = vmatprep.subr.bf16.mxu0 0
        %453 = vmatpush1.bf16.msra.mxu0 %v327
        %454 = vmatprep.subr.bf16.mxu0 0
        %455 = vmatpush1.bf16.msra.mxu0 %v330
        %456 = vmatprep.subr.bf16.mxu0 0
        %457 = vmatpush1.bf16.msra.mxu0 %v333
        %458 = vmatprep.subr.bf16.mxu0 0
        %459 = vmatpush1.bf16.msra.mxu0 %v336
        %460 = vmatprep.subr.bf16.mxu0 0
        %461 = vmatpush1.bf16.msra.mxu0 %v339
        %462 = vmatprep.subr.bf16.mxu0 0
        %463 = vmatpush1.bf16.msra.mxu0 %v342
        %464 = vmatprep.subr.bf16.mxu0 0
        %465 = vmatpush1.bf16.msra.mxu0 0
        %466 = vmatprep.subr.bf16.mxu0 0
        %467 = vmatpush1.bf16.msra.mxu0 0
        %468 = vmatprep.subr.bf16.mxu0 0
        %469 = vmatpush1.bf16.msra.mxu0 0
        %470 = vmatprep.subr.bf16.mxu0 0
        %471 = vmatpush1.bf16.msra.mxu0 0
        %472 = vmatprep.subr.bf16.mxu0 0
        %473 = vmatpush1.bf16.msra.mxu0 0
        %474 = vmatprep.subr.bf16.mxu0 0
        %475 = vmatpush1.bf16.msra.mxu0 0
        %476 = vmatprep.subr.bf16.mxu0 0
        %477 = vmatpush1.bf16.msra.mxu0 0
        %478 = vmatprep.subr.bf16.mxu0 0
        %479 = vmatpush1.bf16.msra.mxu0 0
        %480 = vmatprep.mubr.bf16.mxu0 0
        %481 = vmatmul.mubr.bf16.gmra.mrb[0].mxu0 %v229
        %v482 = vpop.f32.mrb[0].mxu0
        %v483 = vadd.f32 0.0, %v482
        %v484 = vpop.f32.mrb[0].mxu0
        %v485 = vpop.f32.mrb[0].mxu0
        %v486 = vadd.f32 0.0, %v485
        %v487 = vpop.f32.mrb[0].mxu0
        %488 = vmatprep.mubr.bf16.mxu0 0
        %489 = vmatmul.mubr.bf16.gmra.mrb[0].mxu0 %v230
        %v490 = vpop.f32.mrb[0].mxu0
        %v491 = vadd.f32 0.0, %v490
        %v492 = vpop.f32.mrb[0].mxu0
        %v493 = vpop.f32.mrb[0].mxu0
        %v494 = vadd.f32 0.0, %v493
        %v495 = vpop.f32.mrb[0].mxu0
        %496 = vmatprep.mubr.bf16.mxu0 0
        %497 = vmatmul.mubr.bf16.gmra.mrb[0].mxu0 %v231
        %v498 = vpop.f32.mrb[0].mxu0
        %v499 = vadd.f32 0.0, %v498
        %v500 = vpop.f32.mrb[0].mxu0
        %v501 = vpop.f32.mrb[0].mxu0
        %v502 = vadd.f32 0.0, %v501
        %v503 = vpop.f32.mrb[0].mxu0
        %504 = vmatprep.mubr.bf16.mxu0 0
        %505 = vmatmul.mubr.bf16.gmra.mrb[0].mxu0 %v232
        %v506 = vpop.f32.mrb[0].mxu0
        %v507 = vadd.f32 0.0, %v506
        %v508 = vpop.f32.mrb[0].mxu0
        %v509 = vpop.f32.mrb[0].mxu0
        %v510 = vadd.f32 0.0, %v509
        %v511 = vpop.f32.mrb[0].mxu0
        %512 = vmatprep.mubr.bf16.mxu0 0
        %513 = vmatmul.mubr.bf16.gmra.mrb[0].mxu0 %v233
        %v514 = vpop.f32.mrb[0].mxu0
        %v515 = vadd.f32 0.0, %v514
        %v516 = vpop.f32.mrb[0].mxu0
        %v517 = vpop.f32.mrb[0].mxu0
        %v518 = vpop.f32.mrb[0].mxu0
        %519 = vdwg.mxu0
        %s520 = scalar_lea.vmem %s168, 36
        %v521 = vld [vmem:[%s520] sm:$0xf]
        %v522 = vld [vmem:[%s520 + $0x4] sm:$0xf]
        %v523 = vld [vmem:[%s520 + $0x8] sm:$0xf]
        %v524 = vld [vmem:[%s520 + $0xc] sm:$0xf]
        %v525 = vld [vmem:[%s520 + $0x10] sm:$0xf]
        %v526 = vld [vmem:[%s520 + $0x14] sm:$0xf]
        %v527 = vld [vmem:[%s520 + $0x18] sm:$0xf]
        %v528 = vld [vmem:[%s520 + $0x1c] sm:$0xf]
        %v529 = vld [vmem:[%s520 + $0x20] sm:$0xf]
        %v539 = vunpack.c.l.b16 %v521
        %v540 = vunpack.c.l.b16 %v522
        %v541 = vunpack.c.l.b16 %v523
        %v542 = vunpack.c.l.b16 %v524
        %v543 = vunpack.c.l.b16 %v525
        %v544 = vunpack.c.l.b16 %v526
        %v545 = vunpack.c.l.b16 %v527
        %v546 = vunpack.c.l.b16 %v528
        %v547 = vunpack.c.l.b16 %v529
        %v548 = vpack.c.b16 %v540, %v539
        %v549 = vpack.c.b16 %v542, %v541
        %v550 = vpack.c.b16 %v544, %v543
        %v551 = vpack.c.b16 %v546, %v545
        %v552 = vpack.c.b16 %v547, %v547
        %558 = vmatprep.subr.bf16.mxu0 %v320
        %559 = vmatpush1.bf16.msra.mxu0 %v319
        %560 = vmatprep.subr.bf16.mxu0 %v323
        %561 = vmatpush1.bf16.msra.mxu0 %v322
        %562 = vmatprep.subr.bf16.mxu0 %v326
        %563 = vmatpush1.bf16.msra.mxu0 %v325
        %564 = vmatprep.subr.bf16.mxu0 %v329
        %565 = vmatpush1.bf16.msra.mxu0 %v328
        %566 = vmatprep.subr.bf16.mxu0 %v332
        %567 = vmatpush1.bf16.msra.mxu0 %v331
        %568 = vmatprep.subr.bf16.mxu0 %v335
        %569 = vmatpush1.bf16.msra.mxu0 %v334
        %570 = vmatprep.subr.bf16.mxu0 %v338
        %571 = vmatpush1.bf16.msra.mxu0 %v337
        %572 = vmatprep.subr.bf16.mxu0 %v341
        %573 = vmatpush1.bf16.msra.mxu0 %v340
        %574 = vmatprep.subr.bf16.mxu0 0
        %575 = vmatpush1.bf16.msra.mxu0 0
        %576 = vmatprep.subr.bf16.mxu0 0
        %577 = vmatpush1.bf16.msra.mxu0 0
        %578 = vmatprep.subr.bf16.mxu0 0
        %579 = vmatpush1.bf16.msra.mxu0 0
        %580 = vmatprep.subr.bf16.mxu0 0
        %581 = vmatpush1.bf16.msra.mxu0 0
        %582 = vmatprep.subr.bf16.mxu0 0
        %583 = vmatpush1.bf16.msra.mxu0 0
        %584 = vmatprep.subr.bf16.mxu0 0
        %585 = vmatpush1.bf16.msra.mxu0 0
        %586 = vmatprep.subr.bf16.mxu0 0
        %587 = vmatpush1.bf16.msra.mxu0 0
        %588 = vmatprep.subr.bf16.mxu0 0
        %589 = vmatpush1.bf16.msra.mxu0 0
        %590 = vmatprep.mubr.bf16.mxu0 0
        %591 = vmatmul.mubr.bf16.gmra.mrb[0].mxu0 %v548
        %v592 = vpop.f32.mrb[0].mxu0
        %v593 = vadd.f32 0.0, %v592
        %v594 = vpop.f32.mrb[0].mxu0
        %v595 = vadd.f32 0.0, %v594
        %v596 = vpop.f32.mrb[0].mxu0
        %v597 = vadd.f32 0.0, %v596
        %v598 = vpop.f32.mrb[0].mxu0
        %v599 = vadd.f32 0.0, %v598
        %600 = vmatprep.mubr.bf16.mxu0 0
        %601 = vmatmul.mubr.bf16.gmra.mrb[0].mxu0 %v549
        %v602 = vpop.f32.mrb[0].mxu0
        %v603 = vadd.f32 0.0, %v602
        %v604 = vpop.f32.mrb[0].mxu0
        %v605 = vadd.f32 0.0, %v604
        %v606 = vpop.f32.mrb[0].mxu0
        %v607 = vadd.f32 0.0, %v606
        %v608 = vpop.f32.mrb[0].mxu0
        %v609 = vadd.f32 0.0, %v608
        %610 = vmatprep.mubr.bf16.mxu0 0
        %611 = vmatmul.mubr.bf16.gmra.mrb[0].mxu0 %v550
        %v612 = vpop.f32.mrb[0].mxu0
        %v613 = vadd.f32 0.0, %v612
        %v614 = vpop.f32.mrb[0].mxu0
        %v615 = vadd.f32 0.0, %v614
        %v616 = vpop.f32.mrb[0].mxu0
        %v617 = vadd.f32 0.0, %v616
        %v618 = vpop.f32.mrb[0].mxu0
        %v619 = vadd.f32 0.0, %v618
        %620 = vmatprep.mubr.bf16.mxu0 0
        %621 = vmatmul.mubr.bf16.gmra.mrb[0].mxu0 %v551
        %v622 = vpop.f32.mrb[0].mxu0
        %v623 = vadd.f32 0.0, %v622
        %v624 = vpop.f32.mrb[0].mxu0
        %v625 = vadd.f32 0.0, %v624
        %v626 = vpop.f32.mrb[0].mxu0
        %v627 = vadd.f32 0.0, %v626
        %v628 = vpop.f32.mrb[0].mxu0
        %v629 = vadd.f32 0.0, %v628
        %630 = vmatprep.mubr.bf16.mxu0 0
        %631 = vmatmul.mubr.bf16.gmra.mrb[0].mxu0 %v552
        %v632 = vpop.f32.mrb[0].mxu0
        %v633 = vadd.f32 0.0, %v632
        %v634 = vpop.f32.mrb[0].mxu0
        %v635 = vadd.f32 0.0, %v634
        %v636 = vpop.f32.mrb[0].mxu0
        %v637 = vpop.f32.mrb[0].mxu0
        %638 = vdwg.mxu0
        %639 = vmatprep.subr.bf16.mxu0 0
        %640 = vmatpush1.bf16.msra.mxu0 %v321
        %641 = vmatprep.subr.bf16.mxu0 0
        %642 = vmatpush1.bf16.msra.mxu0 %v324
        %643 = vmatprep.subr.bf16.mxu0 0
        %644 = vmatpush1.bf16.msra.mxu0 %v327
        %645 = vmatprep.subr.bf16.mxu0 0
        %646 = vmatpush1.bf16.msra.mxu0 %v330
        %647 = vmatprep.subr.bf16.mxu0 0
        %648 = vmatpush1.bf16.msra.mxu0 %v333
        %649 = vmatprep.subr.bf16.mxu0 0
        %650 = vmatpush1.bf16.msra.mxu0 %v336
        %651 = vmatprep.subr.bf16.mxu0 0
        %652 = vmatpush1.bf16.msra.mxu0 %v339
        %653 = vmatprep.subr.bf16.mxu0 0
        %654 = vmatpush1.bf16.msra.mxu0 %v342
        %655 = vmatprep.subr.bf16.mxu0 0
        %656 = vmatpush1.bf16.msra.mxu0 0
        %657 = vmatprep.subr.bf16.mxu0 0
        %658 = vmatpush1.bf16.msra.mxu0 0
        %659 = vmatprep.subr.bf16.mxu0 0
        %660 = vmatpush1.bf16.msra.mxu0 0
        %661 = vmatprep.subr.bf16.mxu0 0
        %662 = vmatpush1.bf16.msra.mxu0 0
        %663 = vmatprep.subr.bf16.mxu0 0
        %664 = vmatpush1.bf16.msra.mxu0 0
        %665 = vmatprep.subr.bf16.mxu0 0
        %666 = vmatpush1.bf16.msra.mxu0 0
        %667 = vmatprep.subr.bf16.mxu0 0
        %668 = vmatpush1.bf16.msra.mxu0 0
        %669 = vmatprep.subr.bf16.mxu0 0
        %670 = vmatpush1.bf16.msra.mxu0 0
        %671 = vmatprep.mubr.bf16.mxu0 0
        %672 = vmatmul.mubr.bf16.gmra.mrb[0].mxu0 %v548
        %v673 = vpop.f32.mrb[0].mxu0
        %v674 = vadd.f32 0.0, %v673
        %v675 = vpop.f32.mrb[0].mxu0
        %v676 = vpop.f32.mrb[0].mxu0
        %v677 = vadd.f32 0.0, %v676
        %v678 = vpop.f32.mrb[0].mxu0
        %679 = vmatprep.mubr.bf16.mxu0 0
        %680 = vmatmul.mubr.bf16.gmra.mrb[0].mxu0 %v549
        %v681 = vpop.f32.mrb[0].mxu0
        %v682 = vadd.f32 0.0, %v681
        %v683 = vpop.f32.mrb[0].mxu0
        %v684 = vpop.f32.mrb[0].mxu0
        %v685 = vadd.f32 0.0, %v684
        %v686 = vpop.f32.mrb[0].mxu0
        %687 = vmatprep.mubr.bf16.mxu0 0
        %688 = vmatmul.mubr.bf16.gmra.mrb[0].mxu0 %v550
        %v689 = vpop.f32.mrb[0].mxu0
        %v690 = vadd.f32 0.0, %v689
        %v691 = vpop.f32.mrb[0].mxu0
        %v692 = vpop.f32.mrb[0].mxu0
        %v693 = vadd.f32 0.0, %v692
        %v694 = vpop.f32.mrb[0].mxu0
        %695 = vmatprep.mubr.bf16.mxu0 0
        %696 = vmatmul.mubr.bf16.gmra.mrb[0].mxu0 %v551
        %v697 = vpop.f32.mrb[0].mxu0
        %v698 = vadd.f32 0.0, %v697
        %v699 = vpop.f32.mrb[0].mxu0
        %v700 = vpop.f32.mrb[0].mxu0
        %v701 = vadd.f32 0.0, %v700
        %v702 = vpop.f32.mrb[0].mxu0
        %703 = vmatprep.mubr.bf16.mxu0 0
        %704 = vmatmul.mubr.bf16.gmra.mrb[0].mxu0 %v552
        %v705 = vpop.f32.mrb[0].mxu0
        %v706 = vadd.f32 0.0, %v705
        %v707 = vpop.f32.mrb[0].mxu0
        %v708 = vpop.f32.mrb[0].mxu0
        %v709 = vpop.f32.mrb[0].mxu0
        %710 = vdwg.mxu0
        %v711 = vmax.f32 %v402, %v593
        %v712 = vmax.f32 %v404, %v595
        %v713 = vmax.f32 %v483, %v674
        %v714 = vmax.f32 %v406, %v597
        %v715 = vmax.f32 %v408, %v599
        %v716 = vmax.f32 %v486, %v677
        %v717 = vmax.f32 %v412, %v603
        %v718 = vmax.f32 %v414, %v605
        %v719 = vmax.f32 %v491, %v682
        %v720 = vmax.f32 %v416, %v607
        %v721 = vmax.f32 %v418, %v609
        %v722 = vmax.f32 %v494, %v685
        %v723 = vmax.f32 %v422, %v613
        %v724 = vmax.f32 %v424, %v615
        %v725 = vmax.f32 %v499, %v690
        %v726 = vmax.f32 %v426, %v617
        %v727 = vmax.f32 %v428, %v619
        %v728 = vmax.f32 %v502, %v693
        %v729 = vmax.f32 %v432, %v623
        %v730 = vmax.f32 %v434, %v625
        %v731 = vmax.f32 %v507, %v698
        %v732 = vmax.f32 %v436, %v627
        %v733 = vmax.f32 %v438, %v629
        %v734 = vmax.f32 %v510, %v701
        %v735 = vmax.f32 %v442, %v633
        %v736 = vmax.f32 %v444, %v635
        %v737 = vmax.f32 %v515, %v706
        %s738 = scalar_lea.vmem %s168, 72
        %v739 = vld [vmem:[%s738] sm:$0xf]
        %v740 = vld [vmem:[%s738 + $0x4] sm:$0xf]
        %v741 = vld [vmem:[%s738 + $0x8] sm:$0xf]
        %v742 = vld [vmem:[%s738 + $0xc] sm:$0xf]
        %v743 = vld [vmem:[%s738 + $0x10] sm:$0xf]
        %v744 = vld [vmem:[%s738 + $0x14] sm:$0xf]
        %v745 = vld [vmem:[%s738 + $0x18] sm:$0xf]
        %v746 = vld [vmem:[%s738 + $0x1c] sm:$0xf]
        %v747 = vld [vmem:[%s738 + $0x20] sm:$0xf]
        %v757 = vunpack.c.l.b16 %v739
        %v758 = vunpack.c.l.b16 %v740
        %v759 = vunpack.c.l.b16 %v741
        %v760 = vunpack.c.l.b16 %v742
        %v761 = vunpack.c.l.b16 %v743
        %v762 = vunpack.c.l.b16 %v744
        %v763 = vunpack.c.l.b16 %v745
        %v764 = vunpack.c.l.b16 %v746
        %v765 = vunpack.c.l.b16 %v747
        %v766 = vpack.c.b16 %v758, %v757
        %v767 = vpack.c.b16 %v760, %v759
        %v768 = vpack.c.b16 %v762, %v761
        %v769 = vpack.c.b16 %v764, %v763
        %v770 = vpack.c.b16 %v765, %v765
        %776 = vmatprep.subr.bf16.mxu0 %v320
        %777 = vmatpush1.bf16.msra.mxu0 %v319
        %778 = vmatprep.subr.bf16.mxu0 %v323
        %779 = vmatpush1.bf16.msra.mxu0 %v322
        %780 = vmatprep.subr.bf16.mxu0 %v326
        %781 = vmatpush1.bf16.msra.mxu0 %v325
        %782 = vmatprep.subr.bf16.mxu0 %v329
        %783 = vmatpush1.bf16.msra.mxu0 %v328
        %784 = vmatprep.subr.bf16.mxu0 %v332
        %785 = vmatpush1.bf16.msra.mxu0 %v331
        %786 = vmatprep.subr.bf16.mxu0 %v335
        %787 = vmatpush1.bf16.msra.mxu0 %v334
        %788 = vmatprep.subr.bf16.mxu0 %v338
        %789 = vmatpush1.bf16.msra.mxu0 %v337
        %790 = vmatprep.subr.bf16.mxu0 %v341
        %791 = vmatpush1.bf16.msra.mxu0 %v340
        %792 = vmatprep.subr.bf16.mxu0 0
        %793 = vmatpush1.bf16.msra.mxu0 0
        %794 = vmatprep.subr.bf16.mxu0 0
        %795 = vmatpush1.bf16.msra.mxu0 0
        %796 = vmatprep.subr.bf16.mxu0 0
        %797 = vmatpush1.bf16.msra.mxu0 0
        %798 = vmatprep.subr.bf16.mxu0 0
        %799 = vmatpush1.bf16.msra.mxu0 0
        %800 = vmatprep.subr.bf16.mxu0 0
        %801 = vmatpush1.bf16.msra.mxu0 0
        %802 = vmatprep.subr.bf16.mxu0 0
        %803 = vmatpush1.bf16.msra.mxu0 0
        %804 = vmatprep.subr.bf16.mxu0 0
        %805 = vmatpush1.bf16.msra.mxu0 0
        %806 = vmatprep.subr.bf16.mxu0 0
        %807 = vmatpush1.bf16.msra.mxu0 0
        %808 = vmatprep.mubr.bf16.mxu0 0
        %809 = vmatmul.mubr.bf16.gmra.mrb[0].mxu0 %v766
        %v810 = vpop.f32.mrb[0].mxu0
        %v811 = vadd.f32 0.0, %v810
        %v812 = vpop.f32.mrb[0].mxu0
        %v813 = vadd.f32 0.0, %v812
        %v814 = vpop.f32.mrb[0].mxu0
        %v815 = vadd.f32 0.0, %v814
        %v816 = vpop.f32.mrb[0].mxu0
        %v817 = vadd.f32 0.0, %v816
        %818 = vmatprep.mubr.bf16.mxu0 0
        %819 = vmatmul.mubr.bf16.gmra.mrb[0].mxu0 %v767
        %v820 = vpop.f32.mrb[0].mxu0
        %v821 = vadd.f32 0.0, %v820
        %v822 = vpop.f32.mrb[0].mxu0
        %v823 = vadd.f32 0.0, %v822
        %v824 = vpop.f32.mrb[0].mxu0
        %v825 = vadd.f32 0.0, %v824
        %v826 = vpop.f32.mrb[0].mxu0
        %v827 = vadd.f32 0.0, %v826
        %828 = vmatprep.mubr.bf16.mxu0 0
        %829 = vmatmul.mubr.bf16.gmra.mrb[0].mxu0 %v768
        %v830 = vpop.f32.mrb[0].mxu0
        %v831 = vadd.f32 0.0, %v830
        %v832 = vpop.f32.mrb[0].mxu0
        %v833 = vadd.f32 0.0, %v832
        %v834 = vpop.f32.mrb[0].mxu0
        %v835 = vadd.f32 0.0, %v834
        %v836 = vpop.f32.mrb[0].mxu0
        %v837 = vadd.f32 0.0, %v836
        %838 = vmatprep.mubr.bf16.mxu0 0
        %839 = vmatmul.mubr.bf16.gmra.mrb[0].mxu0 %v769
        %v840 = vpop.f32.mrb[0].mxu0
        %v841 = vadd.f32 0.0, %v840
        %v842 = vpop.f32.mrb[0].mxu0
        %v843 = vadd.f32 0.0, %v842
        %v844 = vpop.f32.mrb[0].mxu0
        %v845 = vadd.f32 0.0, %v844
        %v846 = vpop.f32.mrb[0].mxu0
        %v847 = vadd.f32 0.0, %v846
        %848 = vmatprep.mubr.bf16.mxu0 0
        %849 = vmatmul.mubr.bf16.gmra.mrb[0].mxu0 %v770
        %v850 = vpop.f32.mrb[0].mxu0
        %v851 = vadd.f32 0.0, %v850
        %v852 = vpop.f32.mrb[0].mxu0
        %v853 = vadd.f32 0.0, %v852
        %v854 = vpop.f32.mrb[0].mxu0
        %v855 = vpop.f32.mrb[0].mxu0
        %856 = vdwg.mxu0
        %857 = vmatprep.subr.bf16.mxu0 0
        %858 = vmatpush1.bf16.msra.mxu0 %v321
        %859 = vmatprep.subr.bf16.mxu0 0
        %860 = vmatpush1.bf16.msra.mxu0 %v324
        %861 = vmatprep.subr.bf16.mxu0 0
        %862 = vmatpush1.bf16.msra.mxu0 %v327
        %863 = vmatprep.subr.bf16.mxu0 0
        %864 = vmatpush1.bf16.msra.mxu0 %v330
        %865 = vmatprep.subr.bf16.mxu0 0
        %866 = vmatpush1.bf16.msra.mxu0 %v333
        %867 = vmatprep.subr.bf16.mxu0 0
        %868 = vmatpush1.bf16.msra.mxu0 %v336
        %869 = vmatprep.subr.bf16.mxu0 0
        %870 = vmatpush1.bf16.msra.mxu0 %v339
        %871 = vmatprep.subr.bf16.mxu0 0
        %872 = vmatpush1.bf16.msra.mxu0 %v342
        %873 = vmatprep.subr.bf16.mxu0 0
        %874 = vmatpush1.bf16.msra.mxu0 0
        %875 = vmatprep.subr.bf16.mxu0 0
        %876 = vmatpush1.bf16.msra.mxu0 0
        %877 = vmatprep.subr.bf16.mxu0 0
        %878 = vmatpush1.bf16.msra.mxu0 0
        %879 = vmatprep.subr.bf16.mxu0 0
        %880 = vmatpush1.bf16.msra.mxu0 0
        %881 = vmatprep.subr.bf16.mxu0 0
        %882 = vmatpush1.bf16.msra.mxu0 0
        %883 = vmatprep.subr.bf16.mxu0 0
        %884 = vmatpush1.bf16.msra.mxu0 0
        %885 = vmatprep.subr.bf16.mxu0 0
        %886 = vmatpush1.bf16.msra.mxu0 0
        %887 = vmatprep.subr.bf16.mxu0 0
        %888 = vmatpush1.bf16.msra.mxu0 0
        %889 = vmatprep.mubr.bf16.mxu0 0
        %890 = vmatmul.mubr.bf16.gmra.mrb[0].mxu0 %v766
        %v891 = vpop.f32.mrb[0].mxu0
        %v892 = vadd.f32 0.0, %v891
        %v893 = vpop.f32.mrb[0].mxu0
        %v894 = vpop.f32.mrb[0].mxu0
        %v895 = vadd.f32 0.0, %v894
        %v896 = vpop.f32.mrb[0].mxu0
        %897 = vmatprep.mubr.bf16.mxu0 0
        %898 = vmatmul.mubr.bf16.gmra.mrb[0].mxu0 %v767
        %v899 = vpop.f32.mrb[0].mxu0
        %v900 = vadd.f32 0.0, %v899
        %v901 = vpop.f32.mrb[0].mxu0
        %v902 = vpop.f32.mrb[0].mxu0
        %v903 = vadd.f32 0.0, %v902
        %v904 = vpop.f32.mrb[0].mxu0
        %905 = vmatprep.mubr.bf16.mxu0 0
        %906 = vmatmul.mubr.bf16.gmra.mrb[0].mxu0 %v768
        %v907 = vpop.f32.mrb[0].mxu0
        %v908 = vadd.f32 0.0, %v907
        %v909 = vpop.f32.mrb[0].mxu0
        %v910 = vpop.f32.mrb[0].mxu0
        %v911 = vadd.f32 0.0, %v910
        %v912 = vpop.f32.mrb[0].mxu0
        %913 = vmatprep.mubr.bf16.mxu0 0
        %914 = vmatmul.mubr.bf16.gmra.mrb[0].mxu0 %v769
        %v915 = vpop.f32.mrb[0].mxu0
        %v916 = vadd.f32 0.0, %v915
        %v917 = vpop.f32.mrb[0].mxu0
        %v918 = vpop.f32.mrb[0].mxu0
        %v919 = vadd.f32 0.0, %v918
        %v920 = vpop.f32.mrb[0].mxu0
        %921 = vmatprep.mubr.bf16.mxu0 0
        %922 = vmatmul.mubr.bf16.gmra.mrb[0].mxu0 %v770
        %v923 = vpop.f32.mrb[0].mxu0
        %v924 = vadd.f32 0.0, %v923
        %v925 = vpop.f32.mrb[0].mxu0
        %v926 = vpop.f32.mrb[0].mxu0
        %v927 = vpop.f32.mrb[0].mxu0
        %928 = vdwg.mxu0
        %v929 = vmax.f32 %v711, %v811
        %v930 = vmax.f32 %v712, %v813
        %v931 = vmax.f32 %v713, %v892
        %v932 = vmax.f32 %v714, %v815
        %v933 = vmax.f32 %v715, %v817
        %v934 = vmax.f32 %v716, %v895
        %v935 = vmax.f32 %v717, %v821
        %v936 = vmax.f32 %v718, %v823
        %v937 = vmax.f32 %v719, %v900
        %v938 = vmax.f32 %v720, %v825
        %v939 = vmax.f32 %v721, %v827
        %v940 = vmax.f32 %v722, %v903
        %v941 = vmax.f32 %v723, %v831
        %v942 = vmax.f32 %v724, %v833
        %v943 = vmax.f32 %v725, %v908
        %v944 = vmax.f32 %v726, %v835
        %v945 = vmax.f32 %v727, %v837
        %v946 = vmax.f32 %v728, %v911
        %v947 = vmax.f32 %v729, %v841
        %v948 = vmax.f32 %v730, %v843
        %v949 = vmax.f32 %v731, %v916
        %v950 = vmax.f32 %v732, %v845
        %v951 = vmax.f32 %v733, %v847
        %v952 = vmax.f32 %v734, %v919
        %v953 = vmax.f32 %v735, %v851
        %v954 = vmax.f32 %v736, %v853
        %v955 = vmax.f32 %v737, %v924
        %v956 = vld [vmem:[%s2] sm:$0x7]
        %v958 = vlaneseq
        %v959 = vshrl.u32 %v958, 7
        %v960 = vsub.s32 0, %v959
        %v961 = vrot.slane %v956, %v960
        %v962 = vlaneseq
        %v963 = vshrl.u32 %v962, 7
        %v964 = vsub.s32 1, %v963
        %v965 = vrot.slane %v956, %v964
        %v966 = vlaneseq
        %v967 = vshrl.u32 %v966, 7
        %v968 = vsub.s32 2, %v967
        %v969 = vrot.slane %v956, %v968
        %v973 = vadd.f32 %v929, %v961
        %v974 = vadd.f32 %v930, %v965
        %v975 = vadd.f32 %v931, %v969
        %v976 = vadd.f32 %v932, %v961
        %v977 = vadd.f32 %v933, %v965
        %v978 = vadd.f32 %v934, %v969
        %v979 = vadd.f32 %v935, %v961
        %v980 = vadd.f32 %v936, %v965
        %v981 = vadd.f32 %v937, %v969
        %v982 = vadd.f32 %v938, %v961
        %v983 = vadd.f32 %v939, %v965
        %v984 = vadd.f32 %v940, %v969
        %v985 = vadd.f32 %v941, %v961
        %v986 = vadd.f32 %v942, %v965
        %v987 = vadd.f32 %v943, %v969
        %v988 = vadd.f32 %v944, %v961
        %v989 = vadd.f32 %v945, %v965
        %v990 = vadd.f32 %v946, %v969
        %v991 = vadd.f32 %v947, %v961
        %v992 = vadd.f32 %v948, %v965
        %v993 = vadd.f32 %v949, %v969
        %v994 = vadd.f32 %v950, %v961
        %v995 = vadd.f32 %v951, %v965
        %v996 = vadd.f32 %v952, %v969
        %v997 = vadd.f32 %v953, %v961
        %v998 = vadd.f32 %v954, %v965
        %v999 = vadd.f32 %v955, %v969
        %v1000 = vmax.f32 %v973, 0.0
        %v1001 = vmax.f32 %v974, 0.0
        %v1002 = vmax.f32 %v975, 0.0
        %v1003 = vmax.f32 %v976, 0.0
        %v1004 = vmax.f32 %v977, 0.0
        %v1005 = vmax.f32 %v978, 0.0
        %v1006 = vmax.f32 %v979, 0.0
        %v1007 = vmax.f32 %v980, 0.0
        %v1008 = vmax.f32 %v981, 0.0
        %v1009 = vmax.f32 %v982, 0.0
        %v1010 = vmax.f32 %v983, 0.0
        %v1011 = vmax.f32 %v984, 0.0
        %v1012 = vmax.f32 %v985, 0.0
        %v1013 = vmax.f32 %v986, 0.0
        %v1014 = vmax.f32 %v987, 0.0
        %v1015 = vmax.f32 %v988, 0.0
        %v1016 = vmax.f32 %v989, 0.0
        %v1017 = vmax.f32 %v990, 0.0
        %v1018 = vmax.f32 %v991, 0.0
        %v1019 = vmax.f32 %v992, 0.0
        %v1020 = vmax.f32 %v993, 0.0
        %v1021 = vmax.f32 %v994, 0.0
        %v1022 = vmax.f32 %v995, 0.0
        %v1023 = vmax.f32 %v996, 0.0
        %v1024 = vmax.f32 %v997, 0.0
        %v1025 = vmax.f32 %v998, 0.0
        %v1026 = vmax.f32 %v999, 0.0
        %1027 = vst [vmem:[%s163] sm:$0xff] %v1000
        %1028 = vst [vmem:[%s163 + $0x8] sm:$0xff] %v1001
        %vm1029 = vcmask 523264
        %1030 = vst.msk [vmem:[%s163 + $0x10] sm:$0xff] %vm1029, %v1002
        %1031 = vst [vmem:[%s163 + $0x18] sm:$0xff] %v1003
        %1032 = vst [vmem:[%s163 + $0x20] sm:$0xff] %v1004
        %1033 = vst.msk [vmem:[%s163 + $0x28] sm:$0xff] %vm1029, %v1005
        %1034 = vst [vmem:[%s163 + $0x30] sm:$0xff] %v1006
        %1035 = vst [vmem:[%s163 + $0x38] sm:$0xff] %v1007
        %1036 = vst.msk [vmem:[%s163 + $0x40] sm:$0xff] %vm1029, %v1008
        %1037 = vst [vmem:[%s163 + $0x48] sm:$0xff] %v1009
        %1038 = vst [vmem:[%s163 + $0x50] sm:$0xff] %v1010
        %1039 = vst.msk [vmem:[%s163 + $0x58] sm:$0xff] %vm1029, %v1011
        %1040 = vst [vmem:[%s163 + $0x60] sm:$0xff] %v1012
        %1041 = vst [vmem:[%s163 + $0x68] sm:$0xff] %v1013
        %1042 = vst.msk [vmem:[%s163 + $0x70] sm:$0xff] %vm1029, %v1014
        %1043 = vst [vmem:[%s163 + $0x78] sm:$0xff] %v1015
        %1044 = vst [vmem:[%s163 + $0x80] sm:$0xff] %v1016
        %1045 = vst.msk [vmem:[%s163 + $0x88] sm:$0xff] %vm1029, %v1017
        %1046 = vst [vmem:[%s163 + $0x90] sm:$0xff] %v1018
        %1047 = vst [vmem:[%s163 + $0x98] sm:$0xff] %v1019
        %1048 = vst.msk [vmem:[%s163 + $0xa0] sm:$0xff] %vm1029, %v1020
        %1049 = vst [vmem:[%s163 + $0xa8] sm:$0xff] %v1021
        %1050 = vst [vmem:[%s163 + $0xb0] sm:$0xff] %v1022
        %1051 = vst.msk [vmem:[%s163 + $0xb8] sm:$0xff] %vm1029, %v1023
        %1052 = vst [vmem:[%s163 + $0xc0] sm:$0xff] %v1024
        %1053 = vst [vmem:[%s163 + $0xc8] sm:$0xff] %v1025
        %1054 = vst.msk [vmem:[%s163 + $0xd0] sm:$0xff] %vm1029, %v1026
        %s1055 = sand.u32 %s93, 1
        %s1056 = scalar_lea.sflag [#allocation3], %s1055
        %s1057 = sand.u32 %s93, 1
        %s1058 = smul.addr %s1057, 216
        %s1059 = scalar_lea.vmem [#allocation2], %s1058
        // Predicated region
        $region33: #{tpu_custom_call.1} parent=31 // pred_check
          %p1060 = pneg %p103
        $region34: #{tpu_custom_call.1} parent=31 // pred_check_branch
          %1062 = sbr.rel (%p1060) target = $region36
        $region35: #{tpu_custom_call.1} parent=31 // pred_region
          %s1064 = ssub.s32 3456, 3456
          %1065 = vsyncadd %s1056, %s1064
          %s1066 = smul.addr %s17, 27
          %s1067 = smul.addr %s1066, 128
          %s1068 = scalar_lea.hbm %s3, %s1067
          %s1069 = sshll.u32 %s1059, 4
          %s1070 = int_to_ptr.vmem [resolvable:$true] %s1069
          %1075 = dma.vmem_to_hbm [thread:$0]  %s1070, 3456, %s1068, %s1056, 384, 384, 24
        $region36: #{tpu_custom_call.1} parent=31 // pred_fallthru
          _
      $region32: #{tpu_custom_call.1} parent=5 // pred_fallthru
        _
      %p1076 = scmp.le.s32.totalorder 2, %s12
      // Predicated region
      $region37: #{tpu_custom_call.1} parent=5 // pred_check
        %p1077 = pneg %p1076
      $region38: #{tpu_custom_call.1} parent=5 // pred_check_branch
        %1079 = sbr.rel (%p1077) target = $region40
      $region39: #{tpu_custom_call.1} parent=5 // pred_region
        %s1080 = ssub.s32 %s12, 2
        // Predicated region
        $region41: #{tpu_custom_call.1} parent=39 // pred_check
          %p1081 = pneg %p109
        $region42: #{tpu_custom_call.1} parent=39 // pred_check_branch
          %1083 = sbr.rel (%p1081) target = $region44
        $region43: #{tpu_custom_call.1} parent=39 // pred_region
          %s1084 = sand.u32 %s94, 1
          %s1085 = scalar_lea.sflag [#allocation3], %s1084
          %s1086 = sand.u32 %s94, 1
          %s1087 = smul.addr %s1086, 216
          %s1088 = scalar_lea.vmem [#allocation2], %s1087
          %1089 = dma.done %s1085, 3456
        $region44: #{tpu_custom_call.1} parent=39 // pred_fallthru
          _
      $region40: #{tpu_custom_call.1} parent=5 // pred_fallthru
        _
    $region6: #{tpu_custom_call.1} parent=1 // loop_footer
      %s16 = sadd.s32 1, %s12
    $region7: #{tpu_custom_call.1} parent=1 // loop_footer_branch
      %11 = sbr.rel target = $region3
    $region8: #{tpu_custom_call.1} parent=1 // loop_exit
      _
    %1090 = vsyncpa [#allocation3], 1
    %s1091 = scalar_lea.sflag [#allocation3], 1
    %1092 = vsyncpa %s1091, 1

</llo_original>
